<compile_context>
chip_gen: v6e
topology: v6e:2x2x1
jax: 0.10.0
libtpu: 0.0.40
codegen_flags: <defaults>
</compile_context>

<pallas_src>
import functools

import jax
import jax.numpy as jnp
import numpy as np
from jax.experimental import pallas as pl
from jax.experimental.pallas import tpu as pltpu


def _round_up(a, b):
    return -(-a // b) * b


def _parse_padding(padding):
    """Mirror of upfirdn2d._parse_padding: int | (padx, pady) | (x0, x1, y0, y1)."""
    if isinstance(padding, int):
        padding = [padding, padding]
    assert isinstance(padding, (list, tuple))
    assert all(isinstance(p, int) for p in padding)
    if len(padding) == 2:
        padx, pady = padding
        padding = [padx, padx, pady, pady]
    padx0, padx1, pady0, pady1 = padding
    return padx0, padx1, pady0, pady1


def _make_blur_kernel(taps, OH_pad, OW_pad):
    """Separable depthwise FIR over a block of planes.

    taps: flipped + normalized 1-D taps (Python floats, static).
    x_ref: VMEM (P, H_in, W_in)  -> o_ref: VMEM (P, OH_pad, OW_pad).
    """
    taps = [float(t) for t in taps]
    ft = len(taps)

    def blur_kernel(x_ref, o_ref):
        xv = x_ref[...].astype(jnp.float32)            # load the block once
        # Vertical (sublane-direction) 1-D FIR pass.
        tmp = taps[0] * xv[:, 0:OH_pad, :]
        for i in range(1, ft):
            tmp = tmp + taps[i] * xv[:, i:i + OH_pad, :]
        # Horizontal (lane-direction) 1-D FIR pass.
        out = taps[0] * tmp[:, :, 0:OW_pad]
        for j in range(1, ft):
            out = out + taps[j] * tmp[:, :, j:j + OW_pad]
        o_ref[...] = out.astype(o_ref.dtype)

    return blur_kernel


@functools.partial(jax.jit, static_argnames=("kernel_1d", "pad"))
def blur(x, kernel_1d=(1, 3, 3, 1), pad=0):
    """Equivalent of Blur(kernel=kernel_1d, pad=pad, padding_mode='zeros')(x).

    x: [B, C, H, W]. Returns [B, C, H + pady0 + pady1 - FT + 1,
                              W + padx0 + padx1 - FT + 1].
    """
    assert x.ndim == 4
    B, C, H0, W0 = x.shape

    # Normalized + flipped separable taps: upfirdn2d (flip_filter=False) is a
    # true convolution, i.e. cross-correlation with the flipped filter, and
    # outer(f, f)/sum separates into two 1-D passes with f/sum(f) (flipped).
    f1 = np.asarray(kernel_1d, dtype=np.float64)
    assert f1.ndim == 1 and f1.size > 0
    taps = tuple((f1 / f1.sum())[::-1].tolist())
    FT = len(taps)

    padx0, padx1, pady0, pady1 = _parse_padding(pad)
    # Negative padding == cropping (upfirdn2d semantics).
    if min(padx0, padx1, pady0, pady1) < 0:
        x = x[:, :,
              max(-pady0, 0):H0 - max(-pady1, 0),
              max(-padx0, 0):W0 - max(-padx1, 0)]
        B, C, H0, W0 = x.shape
        padx0, padx1 = max(padx0, 0), max(padx1, 0)
        pady0, pady1 = max(pady0, 0), max(pady1, 0)

    H = H0 + pady0 + pady1
    W = W0 + padx0 + padx1
    OH = H - FT + 1
    OW = W - FT + 1
    assert OH >= 1 and OW >= 1

    # Lane/sublane-dense kernel output; crop afterwards in XLA.
    OH_pad = _round_up(OH, 8)
    OW_pad = _round_up(OW, 128)
    H_in = _round_up(OH_pad + FT - 1, 8)   # enough rows for all vertical shifts
    W_in = OW_pad + FT - 1                 # enough cols for all horizontal shifts

    # Plane packing: choose P planes per grid step under a conservative VMEM
    # budget (double-buffered I/O + in-kernel f32 intermediates).
    N = B * C
    Wl = _round_up(W_in, 128)
    per_plane_vmem = 4 * (2 * H_in * Wl            # double-buffered input block
                          + 2 * OH_pad * OW_pad    # double-buffered output block
                          + H_in * Wl              # xv value (f32)
                          + OH_pad * Wl)           # tmp value (f32)
    budget = 16 * 1024 * 1024                      # safe on v5e/v6e/v7x
    P = int(max(1, min(N, budget // max(per_plane_vmem, 1), 32)))
    if N > 1:
        # Keep at least 2 grid steps so multi-TC chips can shard the grid.
        P = min(P, -(-N // 2))
    num_steps = -(-N // P)
    N_pad = num_steps * P
    # TODO(synk): row-tile with an (FT-1)-row halo for planes too large to fit
    # a full (P=1) plane in VMEM.

    # One pad op: user zero-padding (top/left) + alignment padding (bottom/right)
    # + zero planes so the plane count divides P.
    x3 = x.reshape(N, H0, W0)
    x3 = jnp.pad(x3, ((0, N_pad - N),
                      (pady0, pady1 + (H_in - H)),
                      (padx0, padx1 + (W_in - W))))

    kernel = _make_blur_kernel(taps, OH_pad, OW_pad)

    out = pl.pallas_call(
        kernel,
        out_shape=jax.ShapeDtypeStruct((N_pad, OH_pad, OW_pad), x.dtype),
        grid_spec=pltpu.PrefetchScalarGridSpec(
            num_scalar_prefetch=0,
            grid=(num_steps,),
            in_specs=[pl.BlockSpec((P, H_in, W_in), lambda n: (n, 0, 0))],
            out_specs=pl.BlockSpec((P, OH_pad, OW_pad), lambda n: (n, 0, 0)),
        ),
        compiler_params=pltpu.CompilerParams(
            dimension_semantics=("parallel",),
            vmem_limit_bytes=40 * 1024 * 1024),
    )(x3)

    out = out[:N, :OH, :OW].reshape(B, C, OH, OW)
    return out


def _reference_blur(x, kernel_1d=(1, 3, 3, 1), pad=0):
    """Pure-JAX reference (same math as _upfirdn2d_ref for up=down=1)."""
    f1 = np.asarray(kernel_1d, dtype=np.float64)
    f = np.outer(f1, f1)
    f = f / f.sum()
    f = f[::-1, ::-1]
    FH, FW = f.shape
    if isinstance(pad, int):
        x = jnp.pad(x, ((0, 0), (0, 0), (pad, pad), (pad, pad)))
    B, C, H, W = x.shape
    OH, OW = H - FH + 1, W - FW + 1
    acc = jnp.zeros((B, C, OH, OW), jnp.float32)
    for i in range(FH):
        for j in range(FW):
            acc = acc + float(f[i, j]) * x[:, :, i:i + OH, j:j + OW].astype(jnp.float32)
    return acc.astype(x.dtype)


if __name__ == "__main__":
    key = jax.random.PRNGKey(0)
    B, C, H, W = 2, 4, 16, 16
    x = jax.random.normal(key, (B, C, H, W), dtype=jnp.float32)

    # pad=0 (module default): valid conv, output shrinks by 3.
    out = blur(x, kernel_1d=(1, 3, 3, 1), pad=0)
    out = jax.block_until_ready(out)
    ref = _reference_blur(x, kernel_1d=(1, 3, 3, 1), pad=0)
    assert out.shape == (B, C, H - 3, W - 3), out.shape
    np.testing.assert_allclose(np.asarray(out), np.asarray(ref), rtol=1e-5, atol=1e-5)

    # pad=2: "grow" variant, exercises the zero-padding path.
    out2 = blur(x, kernel_1d=(1, 3, 3, 1), pad=2)
    out2 = jax.block_until_ready(out2)
    ref2 = _reference_blur(x, kernel_1d=(1, 3, 3, 1), pad=2)
    assert out2.shape == (B, C, H + 1, W + 1), out2.shape
    np.testing.assert_allclose(np.asarray(out2), np.asarray(ref2), rtol=1e-5, atol=1e-5)

    print("KERNEL_OK")
</pallas_src>

<mosaic_0001>
module attributes {stable_mosaic.version = 11 : i64} {
  func.func @blur_kernel(%arg0: i32, %arg1: memref<4x24x131xf32, #tpu.memory_space<vmem>>, %arg2: memref<4x16x128xf32, #tpu.memory_space<vmem>>) attributes {dimension_semantics = [#tpu.dimension_semantics<parallel>], iteration_bounds = array<i64: 2>, scalar_prefetch = 0 : i64, scratch_operands = 0 : i64, tpu.core_type = #tpu.core_type<tc>, window_params = [{transform_indices = @transform_0, window_bounds = array<i64: 4, 24, 131>}, {transform_indices = @transform_1, window_bounds = array<i64: 4, 16, 128>}]} {
    %c0 = arith.constant 0 : index
    %c0_0 = arith.constant 0 : index
    %c0_1 = arith.constant 0 : index
    %0 = vector.load %arg1[%c0, %c0_0, %c0_1] : memref<4x24x131xf32, #tpu.memory_space<vmem>>, vector<4x24x131xf32>
    %1 = vector.extract_strided_slice %0 {offsets = [0, 0, 0], sizes = [4, 16, 131], strides = [1, 1, 1]} : vector<4x24x131xf32> to vector<4x16x131xf32>
    %cst = arith.constant 1.250000e-01 : f32
    %2 = vector.broadcast %cst : f32 to vector<4x16x131xf32>
    %3 = arith.mulf %2, %1 : vector<4x16x131xf32>
    %4 = vector.extract_strided_slice %0 {offsets = [0, 1, 0], sizes = [4, 16, 131], strides = [1, 1, 1]} : vector<4x24x131xf32> to vector<4x16x131xf32>
    %cst_2 = arith.constant 3.750000e-01 : f32
    %5 = vector.broadcast %cst_2 : f32 to vector<4x16x131xf32>
    %6 = arith.mulf %5, %4 : vector<4x16x131xf32>
    %7 = arith.addf %3, %6 : vector<4x16x131xf32>
    %8 = vector.extract_strided_slice %0 {offsets = [0, 2, 0], sizes = [4, 16, 131], strides = [1, 1, 1]} : vector<4x24x131xf32> to vector<4x16x131xf32>
    %cst_3 = arith.constant 3.750000e-01 : f32
    %9 = vector.broadcast %cst_3 : f32 to vector<4x16x131xf32>
    %10 = arith.mulf %9, %8 : vector<4x16x131xf32>
    %11 = arith.addf %7, %10 : vector<4x16x131xf32>
    %12 = vector.extract_strided_slice %0 {offsets = [0, 3, 0], sizes = [4, 16, 131], strides = [1, 1, 1]} : vector<4x24x131xf32> to vector<4x16x131xf32>
    %cst_4 = arith.constant 1.250000e-01 : f32
    %13 = vector.broadcast %cst_4 : f32 to vector<4x16x131xf32>
    %14 = arith.mulf %13, %12 : vector<4x16x131xf32>
    %15 = arith.addf %11, %14 : vector<4x16x131xf32>
    %16 = vector.extract_strided_slice %15 {offsets = [0, 0, 0], sizes = [4, 16, 128], strides = [1, 1, 1]} : vector<4x16x131xf32> to vector<4x16x128xf32>
    %cst_5 = arith.constant 1.250000e-01 : f32
    %17 = vector.broadcast %cst_5 : f32 to vector<4x16x128xf32>
    %18 = arith.mulf %17, %16 : vector<4x16x128xf32>
    %19 = vector.extract_strided_slice %15 {offsets = [0, 0, 1], sizes = [4, 16, 128], strides = [1, 1, 1]} : vector<4x16x131xf32> to vector<4x16x128xf32>
    %cst_6 = arith.constant 3.750000e-01 : f32
    %20 = vector.broadcast %cst_6 : f32 to vector<4x16x128xf32>
    %21 = arith.mulf %20, %19 : vector<4x16x128xf32>
    %22 = arith.addf %18, %21 : vector<4x16x128xf32>
    %23 = vector.extract_strided_slice %15 {offsets = [0, 0, 2], sizes = [4, 16, 128], strides = [1, 1, 1]} : vector<4x16x131xf32> to vector<4x16x128xf32>
    %cst_7 = arith.constant 3.750000e-01 : f32
    %24 = vector.broadcast %cst_7 : f32 to vector<4x16x128xf32>
    %25 = arith.mulf %24, %23 : vector<4x16x128xf32>
    %26 = arith.addf %22, %25 : vector<4x16x128xf32>
    %27 = vector.extract_strided_slice %15 {offsets = [0, 0, 3], sizes = [4, 16, 128], strides = [1, 1, 1]} : vector<4x16x131xf32> to vector<4x16x128xf32>
    %cst_8 = arith.constant 1.250000e-01 : f32
    %28 = vector.broadcast %cst_8 : f32 to vector<4x16x128xf32>
    %29 = arith.mulf %28, %27 : vector<4x16x128xf32>
    %30 = arith.addf %26, %29 : vector<4x16x128xf32>
    %c0_9 = arith.constant 0 : index
    %c0_10 = arith.constant 0 : index
    %c0_11 = arith.constant 0 : index
    %31 = vector.load %arg2[%c0_9, %c0_10, %c0_11] : memref<4x16x128xf32, #tpu.memory_space<vmem>>, vector<4x16x128xf32>
    tpu.vector_store %arg2[%c0_9, %c0_10, %c0_11], %30 {strides = array<i32>} : memref<4x16x128xf32, #tpu.memory_space<vmem>>, vector<4x16x128xf32>,
    return
  }
  func.func @transform_0(%arg0: i32) -> (i32, i32, i32) {
    %c0_i32 = arith.constant 0 : i32
    %c0_i32_0 = arith.constant 0 : i32
    %c0_i32_1 = arith.constant 0 : i32
    return %arg0, %c0_i32, %c0_i32_0 : i32, i32, i32
  }
  func.func @transform_1(%arg0: i32) -> (i32, i32, i32) {
    %c0_i32 = arith.constant 0 : i32
    %c0_i32_0 = arith.constant 0 : i32
    %c0_i32_1 = arith.constant 0 : i32
    return %arg0, %c0_i32, %c0_i32_0 : i32, i32, i32
  }
}

</mosaic_0001>

<llo_original>
// kernel: blur.1
$region0: #{blur.1}
  #allocation0 [shape = 'u32[]', space=smem, size = 0x4, offset = 0x4, fixed_abs, tag = 'smem constant byte address 0x4 - core index']
  #allocation1 [shape = 'u32[144,128]{1,0:T(1,128)}', space=vmem, size = 0x12000, scoped, tag = 'internal scratch']
  %s0 = inlined_call_operand.vmem [shape: f32[8,24,131], index: 0, kind: input, shape index: {}]
  %s1 = inlined_call_operand.vmem [shape: f32[8,16,128], index: 1, kind: output, shape index: {}]
  %s2 = sld [smem:[#allocation0]]
  $region37: #{blur.1} parent=0
    _
  %s4 = ssub.s32 1, %s2
  %s5 = scalar_select 0, %s4, %s2
  loop: start=0, step=1, limit=4
  $region2: #{blur.1} parent=0 // loop_pre_header
    _
  $region3: #{blur.1} parent=0 // loop_header
    %s7 = sphi 0, %s11
    %p8 = scmp.ge.s32.totalorder %s7, 4
    %s17 = sphi 0, %s19
    %s20 = sphi 0, %s17
    %s21 = sphi 0, %s20
    %s37 = sphi 0, %s21
    %s43 = sphi 0, %s45
    %s46 = sphi 0, %s43
    %s47 = sphi 0, %s46
    %s63 = sphi 0, %s47
  $region4: #{blur.1} parent=0 // loop_header_branch
    %10 = sbr.rel (%p8) target = $region8
  $region5: #{blur.1} parent=0 // loop_body
    %s12 = ssub.s32 %s7, 1
    %s13 = ssub.s32 %s7, 2
    %s14 = sadd.s32 %s7, 1
    %s15 = ssub.s32 %s7, %s14
    %p16 = scmp.eq.s32.totalorder %s15, 0
    %s18 = sadd.s32 %s17, 1
    %s19 = scalar_select %p16, %s17, %s18
    %p22 = pneg %p16
    %p23 = scmp.eq.s32.totalorder %s7, 1
    %p24 = por %p22, %p23
    %p25 = scmp.ne.s32.totalorder %s17, %s20
    %p26 = scmp.eq.s32.totalorder %s7, 0
    %p27 = por %p25, %p26
    %p28 = scmp.ne.s32.totalorder %s17, %s20
    %p29 = scmp.eq.s32.totalorder %s12, 1
    %p30 = por %p28, %p29
    %p31 = scmp.ne.s32.totalorder %s20, %s21
    %p32 = scmp.eq.s32.totalorder %s12, 0
    %p33 = por %p31, %p32
    %p34 = scmp.ne.s32.totalorder %s20, %s21
    %p35 = scmp.eq.s32.totalorder %s13, 1
    %p36 = por %p34, %p35
    %p38 = scmp.ne.s32.totalorder %s21, %s37
    %p39 = scmp.eq.s32.totalorder %s13, 0
    %p40 = por %p38, %p39
    %s41 = ssub.s32 %s7, %s14
    %p42 = scmp.eq.s32.totalorder %s41, 0
    %s44 = sadd.s32 %s43, 1
    %s45 = scalar_select %p42, %s43, %s44
    %p48 = pneg %p42
    %p49 = scmp.eq.s32.totalorder %s7, 1
    %p50 = por %p48, %p49
    %p51 = scmp.ne.s32.totalorder %s43, %s46
    %p52 = scmp.eq.s32.totalorder %s7, 0
    %p53 = por %p51, %p52
    %p54 = scmp.ne.s32.totalorder %s43, %s46
    %p55 = scmp.eq.s32.totalorder %s12, 1
    %p56 = por %p54, %p55
    %p57 = scmp.ne.s32.totalorder %s46, %s47
    %p58 = scmp.eq.s32.totalorder %s12, 0
    %p59 = por %p57, %p58
    %p60 = scmp.ne.s32.totalorder %s46, %s47
    %p61 = scmp.eq.s32.totalorder %s13, 1
    %p62 = por %p60, %p61
    %p64 = scmp.ne.s32.totalorder %s47, %s63
    %p65 = scmp.eq.s32.totalorder %s13, 0
    %p66 = por %p64, %p65
    %p67 = scmp.le.s32.totalorder 1, %s7
    %p68 = scmp.lt.s32.totalorder %s7, 3
    %p69 = pnand %p67, %p68
    %p70 = pneg %p69
    // Predicated region
    $region9: #{blur.1} parent=5 // pred_check
      _
    $region10: #{blur.1} parent=5 // pred_check_branch
      %72 = sbr.rel (%p69) target = $region12
    $region11: #{blur.1} parent=5 // pred_region
      %s73 = ssub.s32 %s7, 1
    $region12: #{blur.1} parent=5 // pred_fallthru
      _
    %p74 = scmp.lt.s32.totalorder %s7, 2
    // Predicated region
    $region13: #{blur.1} parent=5 // pred_check
      %p75 = pneg %p74
    $region14: #{blur.1} parent=5 // pred_check_branch
      %77 = sbr.rel (%p75) target = $region16
    $region15: #{blur.1} parent=5 // pred_region
      // Predicated region
      $region17: #{blur.1} parent=15 // pred_check
        %p78 = pneg %p27
      $region18: #{blur.1} parent=15 // pred_check_branch
        %80 = sbr.rel (%p78) target = $region20
      $region19: #{blur.1} parent=15 // pred_region
        %s81 = smul.u32 4, %s7
        %p82 = scmp.lt.s32.totalorder %s81, 7
        %s83 = scalar_select %p82, %s81, 7
        %s84 = smul.addr %s83, 6
        %s85 = smul.addr %s84, 8
        %s86 = scalar_lea.vmem %s0, %s85
        %s87 = smul.u32 4, %s7
      $region20: #{blur.1} parent=15 // pred_fallthru
        _
    $region16: #{blur.1} parent=5 // pred_fallthru
      _
    %p88 = scmp.le.s32.totalorder 1, %s7
    %p89 = scmp.lt.s32.totalorder %s7, 3
    %p90 = pnand %p88, %p89
    %p91 = pneg %p90
    // Predicated region
    $region21: #{blur.1} parent=5 // pred_check
      _
    $region22: #{blur.1} parent=5 // pred_check_branch
      %93 = sbr.rel (%p90) target = $region24
    $region23: #{blur.1} parent=5 // pred_region
      %s94 = ssub.s32 %s7, 1
      %s95 = smul.u32 4, %s12
      %p96 = scmp.lt.s32.totalorder %s95, 7
      %s97 = scalar_select %p96, %s95, 7
      %s98 = smul.addr %s97, 6
      %s99 = smul.addr %s98, 8
      %s100 = scalar_lea.vmem %s0, %s99
      %p101 = pneg %p33
      %p102 = pneg %p30
      %p103 = pneg %p59
      %p104 = pneg %p56
      %s105 = smul.u32 4, %s12
      %p106 = scmp.lt.s32.totalorder %s105, 7
      %s107 = scalar_select %p106, %s105, 7
      %s108 = smul.addr %s107, 2
      %s109 = smul.addr %s108, 8
      %s110 = scalar_lea.vmem %s1, %s109
      %s111 = smul.u32 4, %s12
      %p112 = scmp.lt.s32.totalorder %s111, 7
      %s113 = scalar_select %p112, %s111, 7
      %s114 = smul.addr %s113, 6
      %s115 = smul.addr %s114, 8
      %s116 = scalar_lea.vmem %s0, %s115
      %s117 = smul.u32 4, %s12
      %s118 = smul.u32 4, %s12
      %p119 = scmp.lt.s32.totalorder %s118, 7
      %s120 = scalar_select %p119, %s118, 7
      %s121 = smul.addr %s120, 2
      %s122 = smul.addr %s121, 8
      %s123 = scalar_lea.vmem %s1, %s122
      %s124 = smul.u32 4, %s12
      %v125 = vld [vmem:[%s116] sm:$0xff]
      %v126 = vld [vmem:[%s116 + $0x8] sm:$0xff]
      %v127 = vld [vmem:[%s116 + $0x10] sm:$0xff]
      %v128 = vld [vmem:[%s116 + $0x18] sm:$0xff]
      %v129 = vld [vmem:[%s116 + $0x20] sm:$0xff]
      %v130 = vld [vmem:[%s116 + $0x28] sm:$0xff]
      %v131 = vld [vmem:[%s116 + $0x30] sm:$0xff]
      %v132 = vld [vmem:[%s116 + $0x38] sm:$0xff]
      %v133 = vld [vmem:[%s116 + $0x40] sm:$0xff]
      %v134 = vld [vmem:[%s116 + $0x48] sm:$0xff]
      %v135 = vld [vmem:[%s116 + $0x50] sm:$0xff]
      %v136 = vld [vmem:[%s116 + $0x58] sm:$0xff]
      %v137 = vld [vmem:[%s116 + $0x60] sm:$0xff]
      %v138 = vld [vmem:[%s116 + $0x68] sm:$0xff]
      %v139 = vld [vmem:[%s116 + $0x70] sm:$0xff]
      %v140 = vld [vmem:[%s116 + $0x78] sm:$0xff]
      %v141 = vld [vmem:[%s116 + $0x80] sm:$0xff]
      %v142 = vld [vmem:[%s116 + $0x88] sm:$0xff]
      %v143 = vld [vmem:[%s116 + $0x90] sm:$0xff]
      %v144 = vld [vmem:[%s116 + $0x98] sm:$0xff]
      %v145 = vld [vmem:[%s116 + $0xa0] sm:$0xff]
      %v146 = vld [vmem:[%s116 + $0xa8] sm:$0xff]
      %v147 = vld [vmem:[%s116 + $0xb0] sm:$0xff]
      %v148 = vld [vmem:[%s116 + $0xb8] sm:$0xff]
      %v149 = vmul.f32 %v125, 0.125
      %v150 = vmul.f32 %v126, 0.125
      %v151 = vmul.f32 %v127, 0.125
      %v152 = vmul.f32 %v128, 0.125
      %v153 = vmul.f32 %v131, 0.125
      %v154 = vmul.f32 %v132, 0.125
      %v155 = vmul.f32 %v133, 0.125
      %v156 = vmul.f32 %v134, 0.125
      %v157 = vmul.f32 %v137, 0.125
      %v158 = vmul.f32 %v138, 0.125
      %v159 = vmul.f32 %v139, 0.125
      %v160 = vmul.f32 %v140, 0.125
      %v161 = vmul.f32 %v143, 0.125
      %v162 = vmul.f32 %v144, 0.125
      %v163 = vmul.f32 %v145, 0.125
      %v164 = vmul.f32 %v146, 0.125
      %v165 = vmul.f32 %v125, 0.375
      %v166 = vmul.f32 %v126, 0.375
      %v167 = vmul.f32 %v127, 0.375
      %v168 = vmul.f32 %v128, 0.375
      %v169 = vmul.f32 %v129, 0.375
      %v170 = vmul.f32 %v130, 0.375
      %v171 = vmul.f32 %v131, 0.375
      %v172 = vmul.f32 %v132, 0.375
      %v173 = vmul.f32 %v133, 0.375
      %v174 = vmul.f32 %v134, 0.375
      %v175 = vmul.f32 %v135, 0.375
      %v176 = vmul.f32 %v136, 0.375
      %v177 = vmul.f32 %v137, 0.375
      %v178 = vmul.f32 %v138, 0.375
      %v179 = vmul.f32 %v139, 0.375
      %v180 = vmul.f32 %v140, 0.375
      %v181 = vmul.f32 %v141, 0.375
      %v182 = vmul.f32 %v142, 0.375
      %v183 = vmul.f32 %v143, 0.375
      %v184 = vmul.f32 %v144, 0.375
      %v185 = vmul.f32 %v145, 0.375
      %v186 = vmul.f32 %v146, 0.375
      %v187 = vmul.f32 %v147, 0.375
      %v188 = vmul.f32 %v148, 0.375
      %vm213 = vcmask 1046528
      %v214 = vrot.slane %v165, 1
      %v215 = vrot.slane %v167, 1
      %v216 = vsel %vm213, %v214, %v215
      %v217 = vrot.slane %v166, 1
      %v218 = vrot.slane %v168, 1
      %v219 = vsel %vm213, %v217, %v218
      %v220 = vrot.slane %v169, 1
      %v221 = vsel %vm213, %v215, %v220
      %v222 = vrot.slane %v170, 1
      %v223 = vsel %vm213, %v218, %v222
      %v224 = vrot.slane %v171, 1
      %v225 = vrot.slane %v173, 1
      %v226 = vsel %vm213, %v224, %v225
      %v227 = vrot.slane %v172, 1
      %v228 = vrot.slane %v174, 1
      %v229 = vsel %vm213, %v227, %v228
      %v230 = vrot.slane %v175, 1
      %v231 = vsel %vm213, %v225, %v230
      %v232 = vrot.slane %v176, 1
      %v233 = vsel %vm213, %v228, %v232
      %v234 = vrot.slane %v177, 1
      %v235 = vrot.slane %v179, 1
      %v236 = vsel %vm213, %v234, %v235
      %v237 = vrot.slane %v178, 1
      %v238 = vrot.slane %v180, 1
      %v239 = vsel %vm213, %v237, %v238
      %v240 = vrot.slane %v181, 1
      %v241 = vsel %vm213, %v235, %v240
      %v242 = vrot.slane %v182, 1
      %v243 = vsel %vm213, %v238, %v242
      %v244 = vrot.slane %v183, 1
      %v245 = vrot.slane %v185, 1
      %v246 = vsel %vm213, %v244, %v245
      %v247 = vrot.slane %v184, 1
      %v248 = vrot.slane %v186, 1
      %v249 = vsel %vm213, %v247, %v248
      %v250 = vrot.slane %v187, 1
      %v251 = vsel %vm213, %v245, %v250
      %v252 = vrot.slane %v188, 1
      %v253 = vsel %vm213, %v248, %v252
      %v270 = vadd.f32 %v149, %v216
      %v271 = vadd.f32 %v150, %v219
      %v272 = vadd.f32 %v151, %v221
      %v273 = vadd.f32 %v152, %v223
      %v274 = vadd.f32 %v153, %v226
      %v275 = vadd.f32 %v154, %v229
      %v276 = vadd.f32 %v155, %v231
      %v277 = vadd.f32 %v156, %v233
      %v278 = vadd.f32 %v157, %v236
      %v279 = vadd.f32 %v158, %v239
      %v280 = vadd.f32 %v159, %v241
      %v281 = vadd.f32 %v160, %v243
      %v282 = vadd.f32 %v161, %v246
      %v283 = vadd.f32 %v162, %v249
      %v284 = vadd.f32 %v163, %v251
      %v285 = vadd.f32 %v164, %v253
      %vm286 = vcmask 1045504
      %v287 = vrot.slane %v165, 2
      %v288 = vrot.slane %v167, 2
      %v289 = vsel %vm286, %v287, %v288
      %v290 = vrot.slane %v166, 2
      %v291 = vrot.slane %v168, 2
      %v292 = vsel %vm286, %v290, %v291
      %v293 = vrot.slane %v169, 2
      %v294 = vsel %vm286, %v288, %v293
      %v295 = vrot.slane %v170, 2
      %v296 = vsel %vm286, %v291, %v295
      %v297 = vrot.slane %v171, 2
      %v298 = vrot.slane %v173, 2
      %v299 = vsel %vm286, %v297, %v298
      %v300 = vrot.slane %v172, 2
      %v301 = vrot.slane %v174, 2
      %v302 = vsel %vm286, %v300, %v301
      %v303 = vrot.slane %v175, 2
      %v304 = vsel %vm286, %v298, %v303
      %v305 = vrot.slane %v176, 2
      %v306 = vsel %vm286, %v301, %v305
      %v307 = vrot.slane %v177, 2
      %v308 = vrot.slane %v179, 2
      %v309 = vsel %vm286, %v307, %v308
      %v310 = vrot.slane %v178, 2
      %v311 = vrot.slane %v180, 2
      %v312 = vsel %vm286, %v310, %v311
      %v313 = vrot.slane %v181, 2
      %v314 = vsel %vm286, %v308, %v313
      %v315 = vrot.slane %v182, 2
      %v316 = vsel %vm286, %v311, %v315
      %v317 = vrot.slane %v183, 2
      %v318 = vrot.slane %v185, 2
      %v319 = vsel %vm286, %v317, %v318
      %v320 = vrot.slane %v184, 2
      %v321 = vrot.slane %v186, 2
      %v322 = vsel %vm286, %v320, %v321
      %v323 = vrot.slane %v187, 2
      %v324 = vsel %vm286, %v318, %v323
      %v325 = vrot.slane %v188, 2
      %v326 = vsel %vm286, %v321, %v325
      %v343 = vadd.f32 %v270, %v289
      %v344 = vadd.f32 %v271, %v292
      %v345 = vadd.f32 %v272, %v294
      %v346 = vadd.f32 %v273, %v296
      %v347 = vadd.f32 %v274, %v299
      %v348 = vadd.f32 %v275, %v302
      %v349 = vadd.f32 %v276, %v304
      %v350 = vadd.f32 %v277, %v306
      %v351 = vadd.f32 %v278, %v309
      %v352 = vadd.f32 %v279, %v312
      %v353 = vadd.f32 %v280, %v314
      %v354 = vadd.f32 %v281, %v316
      %v355 = vadd.f32 %v282, %v319
      %v356 = vadd.f32 %v283, %v322
      %v357 = vadd.f32 %v284, %v324
      %v358 = vadd.f32 %v285, %v326
      %v359 = vmul.f32 %v129, 0.125
      %v360 = vmul.f32 %v130, 0.125
      %v361 = vmul.f32 %v135, 0.125
      %v362 = vmul.f32 %v136, 0.125
      %v363 = vmul.f32 %v141, 0.125
      %v364 = vmul.f32 %v142, 0.125
      %v365 = vmul.f32 %v147, 0.125
      %v366 = vmul.f32 %v148, 0.125
      %vm391 = vcmask 1044480
      %v392 = vrot.slane %v149, 3
      %v393 = vrot.slane %v151, 3
      %v394 = vsel %vm391, %v392, %v393
      %v395 = vrot.slane %v150, 3
      %v396 = vrot.slane %v152, 3
      %v397 = vsel %vm391, %v395, %v396
      %v398 = vrot.slane %v359, 3
      %v399 = vsel %vm391, %v393, %v398
      %v400 = vrot.slane %v360, 3
      %v401 = vsel %vm391, %v396, %v400
      %v402 = vrot.slane %v153, 3
      %v403 = vrot.slane %v155, 3
      %v404 = vsel %vm391, %v402, %v403
      %v405 = vrot.slane %v154, 3
      %v406 = vrot.slane %v156, 3
      %v407 = vsel %vm391, %v405, %v406
      %v408 = vrot.slane %v361, 3
      %v409 = vsel %vm391, %v403, %v408
      %v410 = vrot.slane %v362, 3
      %v411 = vsel %vm391, %v406, %v410
      %v412 = vrot.slane %v157, 3
      %v413 = vrot.slane %v159, 3
      %v414 = vsel %vm391, %v412, %v413
      %v415 = vrot.slane %v158, 3
      %v416 = vrot.slane %v160, 3
      %v417 = vsel %vm391, %v415, %v416
      %v418 = vrot.slane %v363, 3
      %v419 = vsel %vm391, %v413, %v418
      %v420 = vrot.slane %v364, 3
      %v421 = vsel %vm391, %v416, %v420
      %v422 = vrot.slane %v161, 3
      %v423 = vrot.slane %v163, 3
      %v424 = vsel %vm391, %v422, %v423
      %v425 = vrot.slane %v162, 3
      %v426 = vrot.slane %v164, 3
      %v427 = vsel %vm391, %v425, %v426
      %v428 = vrot.slane %v365, 3
      %v429 = vsel %vm391, %v423, %v428
      %v430 = vrot.slane %v366, 3
      %v431 = vsel %vm391, %v426, %v430
      %v448 = vadd.f32 %v343, %v394
      %v449 = vadd.f32 %v344, %v397
      %v450 = vadd.f32 %v345, %v399
      %v451 = vadd.f32 %v346, %v401
      %v452 = vadd.f32 %v347, %v404
      %v453 = vadd.f32 %v348, %v407
      %v454 = vadd.f32 %v349, %v409
      %v455 = vadd.f32 %v350, %v411
      %v456 = vadd.f32 %v351, %v414
      %v457 = vadd.f32 %v352, %v417
      %v458 = vadd.f32 %v353, %v419
      %v459 = vadd.f32 %v354, %v421
      %v460 = vadd.f32 %v355, %v424
      %v461 = vadd.f32 %v356, %v427
      %v462 = vadd.f32 %v357, %v429
      %v463 = vadd.f32 %v358, %v431
      %v464 = vmul.f32 %v448, 0.125
      %v465 = vmul.f32 %v450, 0.125
      %v466 = vmul.f32 %v452, 0.125
      %v467 = vmul.f32 %v454, 0.125
      %v468 = vmul.f32 %v456, 0.125
      %v469 = vmul.f32 %v458, 0.125
      %v470 = vmul.f32 %v460, 0.125
      %v471 = vmul.f32 %v462, 0.125
      %v472 = vmul.f32 %v448, 0.375
      %v473 = vmul.f32 %v449, 0.375
      %v474 = vmul.f32 %v450, 0.375
      %v475 = vmul.f32 %v451, 0.375
      %v476 = vmul.f32 %v452, 0.375
      %v477 = vmul.f32 %v453, 0.375
      %v478 = vmul.f32 %v454, 0.375
      %v479 = vmul.f32 %v455, 0.375
      %v480 = vmul.f32 %v456, 0.375
      %v481 = vmul.f32 %v457, 0.375
      %v482 = vmul.f32 %v458, 0.375
      %v483 = vmul.f32 %v459, 0.375
      %v484 = vmul.f32 %v460, 0.375
      %v485 = vmul.f32 %v461, 0.375
      %v486 = vmul.f32 %v462, 0.375
      %v487 = vmul.f32 %v463, 0.375
      %504 = vrot.lane.b32.xlu0 %v472, 127
      %v505 = vpop.permute.xlu0 %504
      %506 = vrot.lane.b32.xlu0 %v473, 127
      %v507 = vpop.permute.xlu0 %506
      %508 = vrot.lane.b32.xlu0 %v474, 127
      %v509 = vpop.permute.xlu0 %508
      %510 = vrot.lane.b32.xlu0 %v475, 127
      %v511 = vpop.permute.xlu0 %510
      %512 = vrot.lane.b32.xlu0 %v476, 127
      %v513 = vpop.permute.xlu0 %512
      %514 = vrot.lane.b32.xlu0 %v477, 127
      %v515 = vpop.permute.xlu0 %514
      %516 = vrot.lane.b32.xlu0 %v478, 127
      %v517 = vpop.permute.xlu0 %516
      %518 = vrot.lane.b32.xlu0 %v479, 127
      %v519 = vpop.permute.xlu0 %518
      %520 = vrot.lane.b32.xlu0 %v480, 127
      %v521 = vpop.permute.xlu0 %520
      %522 = vrot.lane.b32.xlu0 %v481, 127
      %v523 = vpop.permute.xlu0 %522
      %524 = vrot.lane.b32.xlu0 %v482, 127
      %v525 = vpop.permute.xlu0 %524
      %526 = vrot.lane.b32.xlu0 %v483, 127
      %v527 = vpop.permute.xlu0 %526
      %528 = vrot.lane.b32.xlu0 %v484, 127
      %v529 = vpop.permute.xlu0 %528
      %530 = vrot.lane.b32.xlu0 %v485, 127
      %v531 = vpop.permute.xlu0 %530
      %532 = vrot.lane.b32.xlu0 %v486, 127
      %v533 = vpop.permute.xlu0 %532
      %534 = vrot.lane.b32.xlu0 %v487, 127
      %v535 = vpop.permute.xlu0 %534
      %vm536 = vcmask 1039360
      %v537 = vsel %vm536, %v505, %v507
      %v538 = vsel %vm536, %v509, %v511
      %v539 = vsel %vm536, %v513, %v515
      %v540 = vsel %vm536, %v517, %v519
      %v541 = vsel %vm536, %v521, %v523
      %v542 = vsel %vm536, %v525, %v527
      %v543 = vsel %vm536, %v529, %v531
      %v544 = vsel %vm536, %v533, %v535
      %v553 = vadd.f32 %v464, %v537
      %v554 = vadd.f32 %v465, %v538
      %v555 = vadd.f32 %v466, %v539
      %v556 = vadd.f32 %v467, %v540
      %v557 = vadd.f32 %v468, %v541
      %v558 = vadd.f32 %v469, %v542
      %v559 = vadd.f32 %v470, %v543
      %v560 = vadd.f32 %v471, %v544
      %561 = vrot.lane.b32.xlu0 %v472, 126
      %v562 = vpop.permute.xlu0 %561
      %563 = vrot.lane.b32.xlu0 %v473, 126
      %v564 = vpop.permute.xlu0 %563
      %565 = vrot.lane.b32.xlu0 %v474, 126
      %v566 = vpop.permute.xlu0 %565
      %567 = vrot.lane.b32.xlu0 %v475, 126
      %v568 = vpop.permute.xlu0 %567
      %569 = vrot.lane.b32.xlu0 %v476, 126
      %v570 = vpop.permute.xlu0 %569
      %571 = vrot.lane.b32.xlu0 %v477, 126
      %v572 = vpop.permute.xlu0 %571
      %573 = vrot.lane.b32.xlu0 %v478, 126
      %v574 = vpop.permute.xlu0 %573
      %575 = vrot.lane.b32.xlu0 %v479, 126
      %v576 = vpop.permute.xlu0 %575
      %577 = vrot.lane.b32.xlu0 %v480, 126
      %v578 = vpop.permute.xlu0 %577
      %579 = vrot.lane.b32.xlu0 %v481, 126
      %v580 = vpop.permute.xlu0 %579
      %581 = vrot.lane.b32.xlu0 %v482, 126
      %v582 = vpop.permute.xlu0 %581
      %583 = vrot.lane.b32.xlu0 %v483, 126
      %v584 = vpop.permute.xlu0 %583
      %585 = vrot.lane.b32.xlu0 %v484, 126
      %v586 = vpop.permute.xlu0 %585
      %587 = vrot.lane.b32.xlu0 %v485, 126
      %v588 = vpop.permute.xlu0 %587
      %589 = vrot.lane.b32.xlu0 %v486, 126
      %v590 = vpop.permute.xlu0 %589
      %591 = vrot.lane.b32.xlu0 %v487, 126
      %v592 = vpop.permute.xlu0 %591
      %vm593 = vcmask 1031168
      %v594 = vsel %vm593, %v562, %v564
      %v595 = vsel %vm593, %v566, %v568
      %v596 = vsel %vm593, %v570, %v572
      %v597 = vsel %vm593, %v574, %v576
      %v598 = vsel %vm593, %v578, %v580
      %v599 = vsel %vm593, %v582, %v584
      %v600 = vsel %vm593, %v586, %v588
      %v601 = vsel %vm593, %v590, %v592
      %v610 = vadd.f32 %v553, %v594
      %v611 = vadd.f32 %v554, %v595
      %v612 = vadd.f32 %v555, %v596
      %v613 = vadd.f32 %v556, %v597
      %v614 = vadd.f32 %v557, %v598
      %v615 = vadd.f32 %v558, %v599
      %v616 = vadd.f32 %v559, %v600
      %v617 = vadd.f32 %v560, %v601
      %v618 = vmul.f32 %v449, 0.125
      %v619 = vmul.f32 %v451, 0.125
      %v620 = vmul.f32 %v453, 0.125
      %v621 = vmul.f32 %v455, 0.125
      %v622 = vmul.f32 %v457, 0.125
      %v623 = vmul.f32 %v459, 0.125
      %v624 = vmul.f32 %v461, 0.125
      %v625 = vmul.f32 %v463, 0.125
      %642 = vrot.lane.b32.xlu0 %v464, 125
      %v643 = vpop.permute.xlu0 %642
      %644 = vrot.lane.b32.xlu0 %v618, 125
      %v645 = vpop.permute.xlu0 %644
      %646 = vrot.lane.b32.xlu0 %v465, 125
      %v647 = vpop.permute.xlu0 %646
      %648 = vrot.lane.b32.xlu0 %v619, 125
      %v649 = vpop.permute.xlu0 %648
      %650 = vrot.lane.b32.xlu0 %v466, 125
      %v651 = vpop.permute.xlu0 %650
      %652 = vrot.lane.b32.xlu0 %v620, 125
      %v653 = vpop.permute.xlu0 %652
      %654 = vrot.lane.b32.xlu0 %v467, 125
      %v655 = vpop.permute.xlu0 %654
      %656 = vrot.lane.b32.xlu0 %v621, 125
      %v657 = vpop.permute.xlu0 %656
      %658 = vrot.lane.b32.xlu0 %v468, 125
      %v659 = vpop.permute.xlu0 %658
      %660 = vrot.lane.b32.xlu0 %v622, 125
      %v661 = vpop.permute.xlu0 %660
      %662 = vrot.lane.b32.xlu0 %v469, 125
      %v663 = vpop.permute.xlu0 %662
      %664 = vrot.lane.b32.xlu0 %v623, 125
      %v665 = vpop.permute.xlu0 %664
      %666 = vrot.lane.b32.xlu0 %v470, 125
      %v667 = vpop.permute.xlu0 %666
      %668 = vrot.lane.b32.xlu0 %v624, 125
      %v669 = vpop.permute.xlu0 %668
      %670 = vrot.lane.b32.xlu0 %v471, 125
      %v671 = vpop.permute.xlu0 %670
      %672 = vrot.lane.b32.xlu0 %v625, 125
      %v673 = vpop.permute.xlu0 %672
      %vm674 = vcmask 1022976
      %v675 = vsel %vm674, %v643, %v645
      %v676 = vsel %vm674, %v647, %v649
      %v677 = vsel %vm674, %v651, %v653
      %v678 = vsel %vm674, %v655, %v657
      %v679 = vsel %vm674, %v659, %v661
      %v680 = vsel %vm674, %v663, %v665
      %v681 = vsel %vm674, %v667, %v669
      %v682 = vsel %vm674, %v671, %v673
      %v691 = vadd.f32 %v610, %v675
      %v692 = vadd.f32 %v611, %v676
      %v693 = vadd.f32 %v612, %v677
      %v694 = vadd.f32 %v613, %v678
      %v695 = vadd.f32 %v614, %v679
      %v696 = vadd.f32 %v615, %v680
      %v697 = vadd.f32 %v616, %v681
      %v698 = vadd.f32 %v617, %v682
      %699 = vst [vmem:[%s123] sm:$0xff] %v691
      %700 = vst [vmem:[%s123 + $0x8] sm:$0xff] %v692
      %701 = vst [vmem:[%s123 + $0x10] sm:$0xff] %v693
      %702 = vst [vmem:[%s123 + $0x18] sm:$0xff] %v694
      %703 = vst [vmem:[%s123 + $0x20] sm:$0xff] %v695
      %704 = vst [vmem:[%s123 + $0x28] sm:$0xff] %v696
      %705 = vst [vmem:[%s123 + $0x30] sm:$0xff] %v697
      %706 = vst [vmem:[%s123 + $0x38] sm:$0xff] %v698
      %s707 = smul.u32 4, %s12
      %p708 = scmp.lt.s32.totalorder %s707, 7
      %s709 = scalar_select %p708, %s707, 7
      %s710 = smul.addr %s709, 2
      %s711 = smul.addr %s710, 8
      %s712 = scalar_lea.vmem %s1, %s711
      // Predicated region
      $region25: #{blur.1} parent=23 // pred_check
        %p713 = pneg %p56
      $region26: #{blur.1} parent=23 // pred_check_branch
        %715 = sbr.rel (%p713) target = $region28
      $region27: #{blur.1} parent=23 // pred_region
        %s716 = smul.u32 4, %s12
      $region28: #{blur.1} parent=23 // pred_fallthru
        _
    $region24: #{blur.1} parent=5 // pred_fallthru
      _
    %p717 = scmp.le.s32.totalorder 2, %s7
    // Predicated region
    $region29: #{blur.1} parent=5 // pred_check
      %p718 = pneg %p717
    $region30: #{blur.1} parent=5 // pred_check_branch
      %720 = sbr.rel (%p718) target = $region32
    $region31: #{blur.1} parent=5 // pred_region
      %s721 = ssub.s32 %s7, 2
      // Predicated region
      $region33: #{blur.1} parent=31 // pred_check
        %p722 = pneg %p62
      $region34: #{blur.1} parent=31 // pred_check_branch
        %724 = sbr.rel (%p722) target = $region36
      $region35: #{blur.1} parent=31 // pred_region
        %s725 = smul.u32 4, %s13
        %p726 = scmp.lt.s32.totalorder %s725, 7
        %s727 = scalar_select %p726, %s725, 7
        %s728 = smul.addr %s727, 2
        %s729 = smul.addr %s728, 8
        %s730 = scalar_lea.vmem %s1, %s729
      $region36: #{blur.1} parent=31 // pred_fallthru
        _
    $region32: #{blur.1} parent=5 // pred_fallthru
      _
  $region6: #{blur.1} parent=0 // loop_footer
    %s11 = sadd.s32 1, %s7
  $region7: #{blur.1} parent=0 // loop_footer_branch
    %6 = sbr.rel target = $region3
  $region8: #{blur.1} parent=0 // loop_exit
    _

</llo_original>
